<compile_context>
chip_gen: v7x
topology: tpu7x:2x2x1
jax: 0.10.0
libtpu: 0.0.40
codegen_flags: <defaults>
</compile_context>

<pallas_src>
import functools

import jax
import jax.numpy as jnp
from jax.experimental import pallas as pl
from jax.experimental.pallas import tpu as pltpu

EMBED_SIZE = 8
MLP_LAYERS = [64, 32, 16, 8]

E = EMBED_SIZE
H1, H2, H3, H4 = MLP_LAYERS

# Row offsets of each weight block inside the packed (128, 128) slab.
_R1 = 0                 # w1^T (64, 16), b1
_R2 = _R1 + H1          # w2^T (32, 64), b2
_R3 = _R2 + H2          # w3^T (16, 32), b3
_R4 = _R3 + H3          # w4^T  (8, 16), b4
_RP = _R4 + H4          # wp^T  (1, 16), bp
_BIAS_COL = 64          # lane column holding all biases
_W_ROWS = 128
_W_COLS = 128


def _round_up(x, m):
    return ((x + m - 1) // m) * m


def ncf_kernel(x_ref, w_ref, o_ref):
    """One batch tile of the NCF forward, batch on the lane axis.

    x_ref: (4E, TB) bf16  rows = [u_gmf ; i_gmf ; u_mlp ; i_mlp]
    w_ref: (128, 128) f32 packed weight/bias slab (resident in VMEM)
    o_ref: (1, TB) f32    prediction row (lane-dense store)
    """
    f32, bf16 = jnp.float32, jnp.bfloat16

    # ---- GMF branch (f32 elementwise: v5e VPU has no bf16) --------------
    gmf = x_ref[0:2 * E, :].astype(f32)                 # (16, TB)
    prod = gmf[0:E, :] * gmf[E:2 * E, :]                # (8, TB)

    # ---- resident packed weights: static slices of the slab -------------
    w1 = w_ref[_R1:_R2, 0:2 * E].astype(bf16)           # (64, 16)
    w2 = w_ref[_R2:_R3, 0:H1].astype(bf16)              # (32, 64)
    w3 = w_ref[_R3:_R4, 0:H2].astype(bf16)              # (16, 32)
    w4 = w_ref[_R4:_RP, 0:H3].astype(bf16)              # ( 8, 16)
    wp = w_ref[_RP:_RP + 1, 0:E + H4].astype(bf16)      # ( 1, 16)
    b1 = w_ref[_R1:_R2, _BIAS_COL:_BIAS_COL + 1]        # (64, 1) f32
    b2 = w_ref[_R2:_R3, _BIAS_COL:_BIAS_COL + 1]
    b3 = w_ref[_R3:_R4, _BIAS_COL:_BIAS_COL + 1]
    b4 = w_ref[_R4:_RP, _BIAS_COL:_BIAS_COL + 1]
    bp = w_ref[_RP:_RP + 1, _BIAS_COL:_BIAS_COL + 1]    # ( 1, 1) f32

    # ---- MLP tower: bf16 matmuls, f32 accumulation, lane-dense (N = TB) -
    x_mlp = x_ref[2 * E:4 * E, :]                       # (16, TB) bf16
    h = jnp.maximum(jnp.dot(w1, x_mlp, preferred_element_type=f32) + b1, 0.0)
    h = jnp.maximum(jnp.dot(w2, h.astype(bf16), preferred_element_type=f32) + b2, 0.0)
    h = jnp.maximum(jnp.dot(w3, h.astype(bf16), preferred_element_type=f32) + b3, 0.0)
    h = jnp.maximum(jnp.dot(w4, h.astype(bf16), preferred_element_type=f32) + b4, 0.0)
    # h: (8, TB) f32

    # ---- prediction: [gmf_prod ; mlp_out] against wp -> (1, TB) row -----
    cat = jnp.concatenate([prod, h], axis=0).astype(bf16)        # (16, TB)
    o_ref[...] = jnp.dot(wp, cat, preferred_element_type=f32) + bp


def pack_ncf_weights(params):
    """Pack all MLP/prediction weights + biases into one (128, 128) f32 slab.

    Cols [0:64] hold the transposed weight blocks, col 64 holds the biases.
    Call once (outside the per-batch forward)."""
    slab = jnp.zeros((_W_ROWS, _W_COLS), jnp.float32)
    slab = slab.at[_R1:_R2, 0:2 * E].set(params["w1"].T)
    slab = slab.at[_R2:_R3, 0:H1].set(params["w2"].T)
    slab = slab.at[_R3:_R4, 0:H2].set(params["w3"].T)
    slab = slab.at[_R4:_RP, 0:H3].set(params["w4"].T)
    slab = slab.at[_RP:_RP + 1, 0:E + H4].set(params["wp"].T)
    slab = slab.at[_R1:_R2, _BIAS_COL:_BIAS_COL + 1].set(params["b1"].T)
    slab = slab.at[_R2:_R3, _BIAS_COL:_BIAS_COL + 1].set(params["b2"].T)
    slab = slab.at[_R3:_R4, _BIAS_COL:_BIAS_COL + 1].set(params["b3"].T)
    slab = slab.at[_R4:_RP, _BIAS_COL:_BIAS_COL + 1].set(params["b4"].T)
    slab = slab.at[_RP:_RP + 1, _BIAS_COL:_BIAS_COL + 1].set(params["bp"].T)
    return slab


@functools.partial(jax.jit, static_argnames=("tb",))
def ncf_forward(user_indices, item_indices, params, w_slab, tb=2048):
    """Embedding gather (O(B*E), XLA) + fused NCF body (Pallas)."""
    B = user_indices.shape[0]

    # --- gather only the needed rows (never copy the full tables) --------
    u_gmf = jnp.take(params["user_embed_gmf"], user_indices, axis=0)   # (B, E)
    i_gmf = jnp.take(params["item_embed_gmf"], item_indices, axis=0)
    u_mlp = jnp.take(params["user_embed_mlp"], user_indices, axis=0)
    i_mlp = jnp.take(params["item_embed_mlp"], item_indices, axis=0)
    x = jnp.concatenate([u_gmf, i_gmf, u_mlp, i_mlp], axis=-1)         # (B, 4E)
    # Batch onto the lane axis; bf16 halves the streamed bytes.
    x = x.T.astype(jnp.bfloat16)                                       # (4E, B)

    # --- batch tile: big tiles amortize ~0.35us/step, >=2 steps for v7x's
    #     two TensorCores, and tb<=2048 stays inside v5e's 16 MiB scoped VMEM.
    tb = max(256, _round_up(tb, 256))
    bp0 = _round_up(B, 256)
    if bp0 <= tb:
        tb_eff = bp0
    else:
        tb_eff = min(tb, _round_up((bp0 + 1) // 2, 256))
    Bp = _round_up(B, tb_eff)
    if Bp != B:
        x = jnp.pad(x, ((0, 0), (0, Bp - B)))
    grid = (Bp // tb_eff,)

    x_spec = pl.BlockSpec((4 * E, tb_eff), lambda i: (0, i))
    w_spec = pl.BlockSpec((_W_ROWS, _W_COLS), lambda i: (0, 0))   # resident
    out_spec = pl.BlockSpec((1, tb_eff), lambda i: (0, i))        # lane-dense

    flops_per_row = 2 * (2 * E * H1 + H1 * H2 + H2 * H3 + H3 * H4 + (E + H4)) + E
    cost = pl.CostEstimate(
        flops=Bp * flops_per_row,
        transcendentals=0,
        bytes_accessed=Bp * (4 * E * 2 + 4) + _W_ROWS * _W_COLS * 4,
    )

    out = pl.pallas_call(
        ncf_kernel,
        out_shape=jax.ShapeDtypeStruct((1, Bp), jnp.float32),
        grid_spec=pltpu.PrefetchScalarGridSpec(
            num_scalar_prefetch=0,
            grid=grid,
            in_specs=[x_spec, w_spec],
            out_specs=out_spec,
        ),
        compiler_params=pltpu.CompilerParams(
            dimension_semantics=("parallel",),
        ),
        cost_estimate=cost,
    )(x, w_slab)
    return out[0, :B]                 # matches torch `prediction.squeeze()`


def init_params(key, num_users, num_items, embed_size, mlp_layers):
    keys = jax.random.split(key, 16)
    p = {
        "user_embed_gmf": 0.1 * jax.random.normal(keys[0], (num_users, embed_size), jnp.float32),
        "item_embed_gmf": 0.1 * jax.random.normal(keys[1], (num_items, embed_size), jnp.float32),
        "user_embed_mlp": 0.1 * jax.random.normal(keys[2], (num_users, embed_size), jnp.float32),
        "item_embed_mlp": 0.1 * jax.random.normal(keys[3], (num_items, embed_size), jnp.float32),
    }
    dims = [embed_size * 2] + list(mlp_layers)
    for i in range(len(mlp_layers)):
        p[f"w{i+1}"] = 0.1 * jax.random.normal(keys[4 + 2 * i], (dims[i], dims[i + 1]), jnp.float32)
        p[f"b{i+1}"] = 0.01 * jax.random.normal(keys[5 + 2 * i], (1, dims[i + 1]), jnp.float32)
    p["wp"] = 0.1 * jax.random.normal(keys[12], (embed_size + mlp_layers[-1], 1), jnp.float32)
    p["bp"] = 0.01 * jax.random.normal(keys[13], (1, 1), jnp.float32)
    return p


def ncf_reference(user_indices, item_indices, params):
    """Pure-JAX f32 reference of the torch forward, for correctness check."""
    ue_gmf = params["user_embed_gmf"][user_indices]
    ie_gmf = params["item_embed_gmf"][item_indices]
    gmf = ue_gmf * ie_gmf
    h = jnp.concatenate([params["user_embed_mlp"][user_indices],
                         params["item_embed_mlp"][item_indices]], axis=-1)
    for i in range(1, 5):
        h = jnp.maximum(h @ params[f"w{i}"] + params[f"b{i}"], 0.0)
    cat = jnp.concatenate([gmf, h], axis=-1)
    return (cat @ params["wp"] + params["bp"]).squeeze(-1)


if __name__ == "__main__":
    key = jax.random.PRNGKey(0)
    k_params, k_u, k_i = jax.random.split(key, 3)

    num_users, num_items, batch = 10, 12, 600
    params = init_params(k_params, num_users, num_items, EMBED_SIZE, MLP_LAYERS)
    w_slab = pack_ncf_weights(params)     # packed once, reused every forward

    user_indices = jax.random.randint(k_u, (batch,), 0, num_users, dtype=jnp.int32)
    item_indices = jax.random.randint(k_i, (batch,), 0, num_items, dtype=jnp.int32)

    # tb=256 with batch=600 exercises a multi-step grid plus a padded tail.
    pred = jax.block_until_ready(
        ncf_forward(user_indices, item_indices, params, w_slab, tb=256))
    ref = ncf_reference(user_indices, item_indices, params)

    assert pred.shape == (batch,)
    # bf16 MXU operands (f32 accumulation) -> relaxed tolerance vs f32 reference.
    assert jnp.allclose(pred, ref, atol=2e-2, rtol=2e-2), float(
        jnp.max(jnp.abs(pred - ref)))
    print("KERNEL_OK")
</pallas_src>

<mosaic_0001>
module attributes {stable_mosaic.version = 11 : i64} {
  func.func @ncf_kernel(%arg0: i32, %arg1: memref<32x256xbf16, #tpu.memory_space<vmem>>, %arg2: memref<128x128xf32, #tpu.memory_space<vmem>>, %arg3: memref<1x256xf32, #tpu.memory_space<vmem>>) attributes {dimension_semantics = [#tpu.dimension_semantics<parallel>], iteration_bounds = array<i64: 3>, scalar_prefetch = 0 : i64, scratch_operands = 0 : i64, tpu.core_type = #tpu.core_type<tc>, window_params = [{transform_indices = @transform_0, window_bounds = array<i64: 32, 256>}, {pipeline_mode = #tpu.pipeline_mode<synchronous>, transform_indices = @transform_1, window_bounds = array<i64: 128, 128>}, {transform_indices = @transform_2, window_bounds = array<i64: 1, 256>}]} {
    %c0 = arith.constant 0 : index
    %c0_0 = arith.constant 0 : index
    %0 = vector.load %arg1[%c0, %c0_0] : memref<32x256xbf16, #tpu.memory_space<vmem>>, vector<16x256xbf16>
    %1 = arith.extf %0 : vector<16x256xbf16> to vector<16x256xf32>
    %2 = vector.extract_strided_slice %1 {offsets = [0, 0], sizes = [8, 256], strides = [1, 1]} : vector<16x256xf32> to vector<8x256xf32>
    %3 = vector.extract_strided_slice %1 {offsets = [8, 0], sizes = [8, 256], strides = [1, 1]} : vector<16x256xf32> to vector<8x256xf32>
    %4 = arith.mulf %2, %3 : vector<8x256xf32>
    %c0_1 = arith.constant 0 : index
    %c0_2 = arith.constant 0 : index
    %5 = vector.load %arg2[%c0_1, %c0_2] : memref<128x128xf32, #tpu.memory_space<vmem>>, vector<64x16xf32>
    %6 = arith.truncf %5 : vector<64x16xf32> to vector<64x16xbf16>
    %c64 = arith.constant 64 : index
    %c0_3 = arith.constant 0 : index
    %7 = vector.load %arg2[%c64, %c0_3] : memref<128x128xf32, #tpu.memory_space<vmem>>, vector<32x64xf32>
    %8 = arith.truncf %7 : vector<32x64xf32> to vector<32x64xbf16>
    %c96 = arith.constant 96 : index
    %c0_4 = arith.constant 0 : index
    %9 = vector.load %arg2[%c96, %c0_4] : memref<128x128xf32, #tpu.memory_space<vmem>>, vector<16x32xf32>
    %10 = arith.truncf %9 : vector<16x32xf32> to vector<16x32xbf16>
    %c112 = arith.constant 112 : index
    %c0_5 = arith.constant 0 : index
    %11 = vector.load %arg2[%c112, %c0_5] : memref<128x128xf32, #tpu.memory_space<vmem>>, vector<8x16xf32>
    %12 = arith.truncf %11 : vector<8x16xf32> to vector<8x16xbf16>
    %c120 = arith.constant 120 : index
    %c0_6 = arith.constant 0 : index
    %13 = vector.load %arg2[%c120, %c0_6] : memref<128x128xf32, #tpu.memory_space<vmem>>, vector<1x16xf32>
    %14 = arith.truncf %13 : vector<1x16xf32> to vector<1x16xbf16>
    %c0_7 = arith.constant 0 : index
    %c64_8 = arith.constant 64 : index
    %15 = vector.load %arg2[%c0_7, %c64_8] : memref<128x128xf32, #tpu.memory_space<vmem>>, vector<64x1xf32>
    %c64_9 = arith.constant 64 : index
    %c64_10 = arith.constant 64 : index
    %16 = vector.load %arg2[%c64_9, %c64_10] : memref<128x128xf32, #tpu.memory_space<vmem>>, vector<32x1xf32>
    %c96_11 = arith.constant 96 : index
    %c64_12 = arith.constant 64 : index
    %17 = vector.load %arg2[%c96_11, %c64_12] : memref<128x128xf32, #tpu.memory_space<vmem>>, vector<16x1xf32>
    %c112_13 = arith.constant 112 : index
    %c64_14 = arith.constant 64 : index
    %18 = vector.load %arg2[%c112_13, %c64_14] : memref<128x128xf32, #tpu.memory_space<vmem>>, vector<8x1xf32>
    %c120_15 = arith.constant 120 : index
    %c64_16 = arith.constant 64 : index
    %19 = vector.load %arg2[%c120_15, %c64_16] : memref<128x128xf32, #tpu.memory_space<vmem>>, vector<1x1xf32>
    %c16 = arith.constant 16 : index
    %c0_17 = arith.constant 0 : index
    %20 = vector.load %arg1[%c16, %c0_17] : memref<32x256xbf16, #tpu.memory_space<vmem>>, vector<16x256xbf16>
    %cst = arith.constant dense<0.000000e+00> : vector<64x256xf32>
    %21 = tpu.matmul %6, %20, %cst {dimension_numbers = #tpu.dot_dimension_numbers<[1], [0], [0], [1], [0, 0, 1, 1], [], []>} : vector<64x16xbf16>, vector<16x256xbf16>, vector<64x256xf32> -> vector<64x256xf32>
    %22 = vector.broadcast %15 : vector<64x1xf32> to vector<64x256xf32>
    %23 = arith.addf %21, %22 : vector<64x256xf32>
    %cst_18 = arith.constant 0.000000e+00 : f32
    %24 = vector.broadcast %cst_18 : f32 to vector<64x256xf32>
    %25 = arith.maximumf %23, %24 : vector<64x256xf32>
    %26 = arith.truncf %25 : vector<64x256xf32> to vector<64x256xbf16>
    %cst_19 = arith.constant dense<0.000000e+00> : vector<32x256xf32>
    %27 = tpu.matmul %8, %26, %cst_19 {dimension_numbers = #tpu.dot_dimension_numbers<[1], [0], [0], [1], [0, 0, 1, 1], [], []>} : vector<32x64xbf16>, vector<64x256xbf16>, vector<32x256xf32> -> vector<32x256xf32>
    %28 = vector.broadcast %16 : vector<32x1xf32> to vector<32x256xf32>
    %29 = arith.addf %27, %28 : vector<32x256xf32>
    %cst_20 = arith.constant 0.000000e+00 : f32
    %30 = vector.broadcast %cst_20 : f32 to vector<32x256xf32>
    %31 = arith.maximumf %29, %30 : vector<32x256xf32>
    %32 = arith.truncf %31 : vector<32x256xf32> to vector<32x256xbf16>
    %cst_21 = arith.constant dense<0.000000e+00> : vector<16x256xf32>
    %33 = tpu.matmul %10, %32, %cst_21 {dimension_numbers = #tpu.dot_dimension_numbers<[1], [0], [0], [1], [0, 0, 1, 1], [], []>} : vector<16x32xbf16>, vector<32x256xbf16>, vector<16x256xf32> -> vector<16x256xf32>
    %34 = vector.broadcast %17 : vector<16x1xf32> to vector<16x256xf32>
    %35 = arith.addf %33, %34 : vector<16x256xf32>
    %cst_22 = arith.constant 0.000000e+00 : f32
    %36 = vector.broadcast %cst_22 : f32 to vector<16x256xf32>
    %37 = arith.maximumf %35, %36 : vector<16x256xf32>
    %38 = arith.truncf %37 : vector<16x256xf32> to vector<16x256xbf16>
    %cst_23 = arith.constant dense<0.000000e+00> : vector<8x256xf32>
    %39 = tpu.matmul %12, %38, %cst_23 {dimension_numbers = #tpu.dot_dimension_numbers<[1], [0], [0], [1], [0, 0, 1, 1], [], []>} : vector<8x16xbf16>, vector<16x256xbf16>, vector<8x256xf32> -> vector<8x256xf32>
    %40 = vector.broadcast %18 : vector<8x1xf32> to vector<8x256xf32>
    %41 = arith.addf %39, %40 : vector<8x256xf32>
    %cst_24 = arith.constant 0.000000e+00 : f32
    %42 = vector.broadcast %cst_24 : f32 to vector<8x256xf32>
    %43 = arith.maximumf %41, %42 : vector<8x256xf32>
    %44 = tpu.concatenate %4, %43 in 0 : vector<8x256xf32>, vector<8x256xf32> -> vector<16x256xf32>
    %45 = arith.truncf %44 : vector<16x256xf32> to vector<16x256xbf16>
    %cst_25 = arith.constant dense<0.000000e+00> : vector<1x256xf32>
    %46 = tpu.matmul %14, %45, %cst_25 {dimension_numbers = #tpu.dot_dimension_numbers<[1], [0], [0], [1], [0, 0, 1, 1], [], []>} : vector<1x16xbf16>, vector<16x256xbf16>, vector<1x256xf32> -> vector<1x256xf32>
    %47 = vector.broadcast %19 : vector<1x1xf32> to vector<1x256xf32>
    %48 = arith.addf %46, %47 : vector<1x256xf32>
    %c0_26 = arith.constant 0 : index
    %c0_27 = arith.constant 0 : index
    %49 = vector.load %arg3[%c0_26, %c0_27] : memref<1x256xf32, #tpu.memory_space<vmem>>, vector<1x256xf32>
    tpu.vector_store %arg3[%c0_26, %c0_27], %48 {strides = array<i32>} : memref<1x256xf32, #tpu.memory_space<vmem>>, vector<1x256xf32>,
    return
  }
  func.func @transform_0(%arg0: i32) -> (i32, i32) {
    %c0_i32 = arith.constant 0 : i32
    %c0_i32_0 = arith.constant 0 : i32
    return %c0_i32, %arg0 : i32, i32
  }
  func.func @transform_1(%arg0: i32) -> (i32, i32) {
    %c0_i32 = arith.constant 0 : i32
    %c0_i32_0 = arith.constant 0 : i32
    %c0_i32_1 = arith.constant 0 : i32
    return %c0_i32, %c0_i32_0 : i32, i32
  }
  func.func @transform_2(%arg0: i32) -> (i32, i32) {
    %c0_i32 = arith.constant 0 : i32
    %c0_i32_0 = arith.constant 0 : i32
    return %c0_i32, %arg0 : i32, i32
  }
}

</mosaic_0001>

<llo_original>
// kernel: ncf_forward.1
$region0: #{ncf_forward.1}
  #allocation0 [shape = 'u32[]', space=smem, size = 0x4, offset = 0x4, fixed_abs, tag = 'smem constant byte address 0x4 - core index']
  #allocation1 [shape = 'u32[144,128]{1,0:T(1,128)}', space=vmem, size = 0x12000, scoped, tag = 'internal scratch']
  %s0 = inlined_call_operand.vmem [shape: bf16[32,768], index: 0, kind: input, shape index: {}]
  %s1 = inlined_call_operand.vmem [shape: f32[128,128], index: 1, kind: input, shape index: {}]
  %s2 = inlined_call_operand.vmem [shape: f32[1,768], index: 2, kind: output, shape index: {}]
  %s3 = sld [smem:[#allocation0]]
  $region79: #{ncf_forward.1} parent=0
    _
  %s5 = ssub.s32 1, %s3
  %s6 = scalar_select 0, %s5, %s3
  $region1: #{ncf_forward.1} parent=0
    #allocation2 [shape = 'u8[32768]{0}', space=vmem, size = 0x8000, scoped, tag = 'input window, operand 0']
    loop: start=0, step=1, limit=5
    $region2: #{ncf_forward.1} parent=1 // loop_pre_header
      _
    $region3: #{ncf_forward.1} parent=1 // loop_header
      %s8 = sphi 0, %s12
      %p9 = scmp.ge.s32.totalorder %s8, 5
      %s18 = sphi 0, %s20
      %s21 = sphi 0, %s18
      %s22 = sphi 0, %s21
      %s38 = sphi 0, %s22
      %s42 = sphi 0, %s42
      %s44 = sphi 0, %s42
      %s45 = sphi 0, %s44
      %s59 = sphi 0, %s45
      %s65 = sphi 0, %s67
      %s68 = sphi 0, %s65
      %s69 = sphi 0, %s68
      %s85 = sphi 0, %s69
    $region4: #{ncf_forward.1} parent=1 // loop_header_branch
      %11 = sbr.rel (%p9) target = $region8
    $region5: #{ncf_forward.1} parent=1 // loop_body
      %s13 = ssub.s32 %s8, 1
      %s14 = ssub.s32 %s8, 2
      %s15 = sadd.s32 %s8, 1
      %s16 = ssub.s32 %s8, %s15
      %p17 = scmp.eq.s32.totalorder %s16, 0
      %s19 = sadd.s32 %s18, 1
      %s20 = scalar_select %p17, %s18, %s19
      %p23 = pneg %p17
      %p24 = scmp.eq.s32.totalorder %s8, 2
      %p25 = por %p23, %p24
      %p26 = scmp.ne.s32.totalorder %s18, %s21
      %p27 = scmp.eq.s32.totalorder %s8, 0
      %p28 = por %p26, %p27
      %p29 = scmp.ne.s32.totalorder %s18, %s21
      %p30 = scmp.eq.s32.totalorder %s13, 2
      %p31 = por %p29, %p30
      %p32 = scmp.ne.s32.totalorder %s21, %s22
      %p33 = scmp.eq.s32.totalorder %s13, 0
      %p34 = por %p32, %p33
      %p35 = scmp.ne.s32.totalorder %s21, %s22
      %p36 = scmp.eq.s32.totalorder %s14, 2
      %p37 = por %p35, %p36
      %p39 = scmp.ne.s32.totalorder %s22, %s38
      %p40 = scmp.eq.s32.totalorder %s14, 0
      %p41 = por %p39, %p40
      %s43 = sadd.s32 %s42, 1
      %p46 = scmp.eq.s32.totalorder %s8, 2
      %p47 = scmp.ne.s32.totalorder %s42, %s44
      %p48 = scmp.eq.s32.totalorder %s8, 0
      %p49 = por %p47, %p48
      %p50 = scmp.ne.s32.totalorder %s42, %s44
      %p51 = scmp.eq.s32.totalorder %s13, 2
      %p52 = por %p50, %p51
      %p53 = scmp.ne.s32.totalorder %s44, %s45
      %p54 = scmp.eq.s32.totalorder %s13, 0
      %p55 = por %p53, %p54
      %p56 = scmp.ne.s32.totalorder %s44, %s45
      %p57 = scmp.eq.s32.totalorder %s14, 2
      %p58 = por %p56, %p57
      %p60 = scmp.ne.s32.totalorder %s45, %s59
      %p61 = scmp.eq.s32.totalorder %s14, 0
      %p62 = por %p60, %p61
      %s63 = ssub.s32 %s8, %s15
      %p64 = scmp.eq.s32.totalorder %s63, 0
      %s66 = sadd.s32 %s65, 1
      %s67 = scalar_select %p64, %s65, %s66
      %p70 = pneg %p64
      %p71 = scmp.eq.s32.totalorder %s8, 2
      %p72 = por %p70, %p71
      %p73 = scmp.ne.s32.totalorder %s65, %s68
      %p74 = scmp.eq.s32.totalorder %s8, 0
      %p75 = por %p73, %p74
      %p76 = scmp.ne.s32.totalorder %s65, %s68
      %p77 = scmp.eq.s32.totalorder %s13, 2
      %p78 = por %p76, %p77
      %p79 = scmp.ne.s32.totalorder %s68, %s69
      %p80 = scmp.eq.s32.totalorder %s13, 0
      %p81 = por %p79, %p80
      %p82 = scmp.ne.s32.totalorder %s68, %s69
      %p83 = scmp.eq.s32.totalorder %s14, 2
      %p84 = por %p82, %p83
      %p86 = scmp.ne.s32.totalorder %s69, %s85
      %p87 = scmp.eq.s32.totalorder %s14, 0
      %p88 = por %p86, %p87
      %p89 = scmp.le.s32.totalorder 1, %s8
      %p90 = scmp.lt.s32.totalorder %s8, 4
      %p91 = pnand %p89, %p90
      %p92 = pneg %p91
      // Predicated region
      $region9: #{ncf_forward.1} parent=5 // pred_check
        _
      $region10: #{ncf_forward.1} parent=5 // pred_check_branch
        %94 = sbr.rel (%p91) target = $region12
      $region11: #{ncf_forward.1} parent=5 // pred_region
        %s95 = ssub.s32 %s8, 1
        // Predicated region
        $region13: #{ncf_forward.1} parent=11 // pred_check
          %p96 = pneg %p55
        $region14: #{ncf_forward.1} parent=11 // pred_check_branch
          %98 = sbr.rel (%p96) target = $region16
        $region15: #{ncf_forward.1} parent=11 // pred_region
          _
        $region16: #{ncf_forward.1} parent=11 // pred_fallthru
          _
      $region12: #{ncf_forward.1} parent=5 // pred_fallthru
        _
      %p99 = scmp.lt.s32.totalorder %s8, 3
      // Predicated region
      $region17: #{ncf_forward.1} parent=5 // pred_check
        %p100 = pneg %p99
      $region18: #{ncf_forward.1} parent=5 // pred_check_branch
        %102 = sbr.rel (%p100) target = $region20
      $region19: #{ncf_forward.1} parent=5 // pred_region
        // Predicated region
        $region21: #{ncf_forward.1} parent=19 // pred_check
          %p103 = pneg %p28
        $region22: #{ncf_forward.1} parent=19 // pred_check_branch
          %105 = sbr.rel (%p103) target = $region24
        $region23: #{ncf_forward.1} parent=19 // pred_region
          %s106 = sand.u32 %s18, 1
          %s107 = sand.u32 %s18, 1
          %s108 = smul.addr %s107, 32
          %s109 = scalar_lea.vmem [#allocation2], %s108
          %s110 = smul.u32 2, %s8
          %s111 = smul.addr %s110, 4
          %s112 = scalar_lea.vmem %s0, %s111
          // Predicated region
          $region25: #{ncf_forward.1} parent=23 // pred_check
            _
          $region26: #{ncf_forward.1} parent=23 // pred_check_branch
            %114 = sbr.rel (0) target = $region28
          $region27: #{ncf_forward.1} parent=23 // pred_region
            // Predicated region
            $region29: #{ncf_forward.1} parent=27 // pred_check
              _
            $region30: #{ncf_forward.1} parent=27 // pred_check_branch
              %116 = sbr.rel (0) target = $region32
            $region31: #{ncf_forward.1} parent=27 // pred_region
              // Predicated region
              $region44: #{ncf_forward.1} parent=31 // pred_check
                _
              $region45: #{ncf_forward.1} parent=31 // pred_check_branch
                %137 = sbr.rel (0) target = $region47
              $region46: #{ncf_forward.1} parent=31 // pred_region
                loop: start=0, step=1, limit=1
                $region48: #{ncf_forward.1} parent=46 // loop_pre_header
                  _
                $region49: #{ncf_forward.1} parent=46 // loop_header
                  %s139 = sphi 0, %s143
                  %p140 = scmp.ge.s32.totalorder %s139, 1
                  %s144 = sphi %s112, %s112
                  %s145 = sphi %s109, %s109
                $region50: #{ncf_forward.1} parent=46 // loop_header_branch
                  %142 = sbr.rel (%p140) target = $region54
                $region51: #{ncf_forward.1} parent=46 // loop_body
                  %v146 = vld [vmem:[%s144] sm:$0xff]
                  %147 = vst [vmem:[%s145] sm:$0xff] %v146
                  %v148 = vld [vmem:[%s144 + $0x18] sm:$0xff]
                  %149 = vst [vmem:[%s145 + $0x8] sm:$0xff] %v148
                  %v150 = vld [vmem:[%s144 + $0x30] sm:$0xff]
                  %151 = vst [vmem:[%s145 + $0x10] sm:$0xff] %v150
                  %v152 = vld [vmem:[%s144 + $0x48] sm:$0xff]
                  %153 = vst [vmem:[%s145 + $0x18] sm:$0xff] %v152
                $region52: #{ncf_forward.1} parent=46 // loop_footer
                  %s143 = sadd.s32 1, %s139
                $region53: #{ncf_forward.1} parent=46 // loop_footer_branch
                  %138 = sbr.rel target = $region49
                $region54: #{ncf_forward.1} parent=46 // loop_exit
                  _
              $region47: #{ncf_forward.1} parent=31 // pred_fallthru
                _
              // Predicated region
              $region55: #{ncf_forward.1} parent=31 // pred_check
                _
              $region56: #{ncf_forward.1} parent=31 // pred_check_branch
                %155 = sbr.rel target = $region58
              $region57: #{ncf_forward.1} parent=31 // pred_region
                _
              $region58: #{ncf_forward.1} parent=31 // pred_fallthru
                _
            $region32: #{ncf_forward.1} parent=27 // pred_fallthru
              _
            // Predicated region
            $region33: #{ncf_forward.1} parent=27 // pred_check
              _
            $region34: #{ncf_forward.1} parent=27 // pred_check_branch
              %118 = sbr.rel target = $region36
            $region35: #{ncf_forward.1} parent=27 // pred_region
              loop: start=0, step=1, limit=1
              $region37: #{ncf_forward.1} parent=35 // loop_pre_header
                _
              $region38: #{ncf_forward.1} parent=35 // loop_header
                %s121 = sphi 0, %s125
                %p122 = scmp.ge.s32.totalorder %s121, 1
                %s126 = sphi %s112, %s112
                %s127 = sphi %s109, %s109
              $region39: #{ncf_forward.1} parent=35 // loop_header_branch
                %124 = sbr.rel (%p122) target = $region43
              $region40: #{ncf_forward.1} parent=35 // loop_body
                %v128 = vld [vmem:[%s126] sm:$0xff]
                %129 = vst [vmem:[%s127] sm:$0xff] %v128
                %v130 = vld [vmem:[%s126 + $0x18] sm:$0xff]
                %131 = vst [vmem:[%s127 + $0x8] sm:$0xff] %v130
                %v132 = vld [vmem:[%s126 + $0x30] sm:$0xff]
                %133 = vst [vmem:[%s127 + $0x10] sm:$0xff] %v132
                %v134 = vld [vmem:[%s126 + $0x48] sm:$0xff]
                %135 = vst [vmem:[%s127 + $0x18] sm:$0xff] %v134
              $region41: #{ncf_forward.1} parent=35 // loop_footer
                %s125 = sadd.s32 1, %s121
              $region42: #{ncf_forward.1} parent=35 // loop_footer_branch
                %120 = sbr.rel target = $region38
              $region43: #{ncf_forward.1} parent=35 // loop_exit
                _
            $region36: #{ncf_forward.1} parent=27 // pred_fallthru
              _
          $region28: #{ncf_forward.1} parent=23 // pred_fallthru
            _
          %156 = vnop
        $region24: #{ncf_forward.1} parent=19 // pred_fallthru
          _
      $region20: #{ncf_forward.1} parent=5 // pred_fallthru
        _
      %p157 = scmp.le.s32.totalorder 1, %s8
      %p158 = scmp.lt.s32.totalorder %s8, 4
      %p159 = pnand %p157, %p158
      %p160 = pneg %p159
      // Predicated region
      $region59: #{ncf_forward.1} parent=5 // pred_check
        _
      $region60: #{ncf_forward.1} parent=5 // pred_check_branch
        %162 = sbr.rel (%p159) target = $region62
      $region61: #{ncf_forward.1} parent=5 // pred_region
        %s163 = ssub.s32 %s8, 1
        %s164 = sand.u32 %s21, 1
        %s165 = sand.u32 %s21, 1
        %s166 = smul.addr %s165, 32
        %s167 = scalar_lea.vmem [#allocation2], %s166
        // Predicated region
        $region63: #{ncf_forward.1} parent=61 // pred_check
          %p168 = pneg %p34
        $region64: #{ncf_forward.1} parent=61 // pred_check_branch
          %170 = sbr.rel (%p168) target = $region66
        $region65: #{ncf_forward.1} parent=61 // pred_region
          _
        $region66: #{ncf_forward.1} parent=61 // pred_fallthru
          _
        %s171 = sand.u32 %s21, 1
        %s172 = sand.u32 %s21, 1
        %s173 = smul.addr %s172, 32
        %s174 = scalar_lea.vmem [#allocation2], %s173
        %p175 = pneg %p34
        %p176 = pneg %p31
        %p177 = pneg %p55
        %p178 = pneg %p52
        %p179 = pneg %p81
        %p180 = pneg %p78
        %s181 = smul.u32 2, %s13
        %p182 = scmp.lt.s32.totalorder %s181, 5
        %s183 = scalar_select %p182, %s181, 5
        %s184 = scalar_lea.vmem %s2, %s183
        %s185 = smul.u32 2, %s13
        %s186 = smul.u32 2, %s13
        %p187 = scmp.lt.s32.totalorder %s186, 5
        %s188 = scalar_select %p187, %s186, 5
        %s189 = scalar_lea.vmem %s2, %s188
        %s190 = smul.u32 2, %s13
        %v192 = vld [vmem:[%s167] sm:$0xff]
        %v193 = vld [vmem:[%s167 + $0x8] sm:$0xff]
        %v194 = vunpack.c.l.bf16 %v192
        %v195 = vunpack.c.h.bf16 %v192
        %v196 = vunpack.c.l.bf16 %v193
        %v197 = vunpack.c.h.bf16 %v193
        %v198 = vmul.f32 %v194, %v196
        %v199 = vmul.f32 %v195, %v197
        %v200 = vld [vmem:[%s1] sm:$0xff]
        %v201 = vld [vmem:[%s1 + $0x8] sm:$0xff]
        %v202 = vld [vmem:[%s1 + $0x10] sm:$0xff]
        %v203 = vld [vmem:[%s1 + $0x18] sm:$0xff]
        %v204 = vld [vmem:[%s1 + $0x20] sm:$0xff]
        %v205 = vld [vmem:[%s1 + $0x28] sm:$0xff]
        %v206 = vld [vmem:[%s1 + $0x30] sm:$0xff]
        %v207 = vld [vmem:[%s1 + $0x38] sm:$0xff]
        %v208 = vpack.c.bf16 %v201, %v200
        %v209 = vpack.c.bf16 %v203, %v202
        %v210 = vpack.c.bf16 %v205, %v204
        %v211 = vpack.c.bf16 %v207, %v206
        %v212 = vld [vmem:[%s1 + $0x40] sm:$0xff]
        %v213 = vld [vmem:[%s1 + $0x48] sm:$0xff]
        %v214 = vld [vmem:[%s1 + $0x50] sm:$0xff]
        %v215 = vld [vmem:[%s1 + $0x58] sm:$0xff]
        %v216 = vpack.c.bf16 %v213, %v212
        %v217 = vpack.c.bf16 %v215, %v214
        %v218 = vld [vmem:[%s1 + $0x60] sm:$0xff]
        %v219 = vld [vmem:[%s1 + $0x68] sm:$0xff]
        %v220 = vpack.c.bf16 %v219, %v218
        %v221 = vld [vmem:[%s1 + $0x70] sm:$0xff]
        %v222 = vpack.c.bf16 %v221, %v221
        %v223 = vld [vmem:[%s1 + $0x78] sm:$0x1]
        %v224 = vpack.c.bf16 %v223, %v223
        %v225 = vld [vmem:[%s167 + $0x10] sm:$0xff]
        %v226 = vld [vmem:[%s167 + $0x18] sm:$0xff]
        %228 = vset.pattern.permute.xlu0 64
        %229 = vperm.xlu0 %228, %v200
        %v230 = vpop.permute.xlu0 %229
        %233 = vset.pattern.permute.xlu0 64
        %234 = vperm.xlu0 %233, %v201
        %v235 = vpop.permute.xlu0 %234
        %238 = vset.pattern.permute.xlu0 64
        %239 = vperm.xlu0 %238, %v202
        %v240 = vpop.permute.xlu0 %239
        %243 = vset.pattern.permute.xlu0 64
        %244 = vperm.xlu0 %243, %v203
        %v245 = vpop.permute.xlu0 %244
        %248 = vset.pattern.permute.xlu0 64
        %249 = vperm.xlu0 %248, %v204
        %v250 = vpop.permute.xlu0 %249
        %253 = vset.pattern.permute.xlu0 64
        %254 = vperm.xlu0 %253, %v205
        %v255 = vpop.permute.xlu0 %254
        %258 = vset.pattern.permute.xlu0 64
        %259 = vperm.xlu0 %258, %v206
        %v260 = vpop.permute.xlu0 %259
        %263 = vset.pattern.permute.xlu0 64
        %264 = vperm.xlu0 %263, %v207
        %v265 = vpop.permute.xlu0 %264
        %v269 = vunpack.c.l.b16 %v225
        %v270 = vunpack.c.h.b16 %v225
        %v271 = vunpack.c.l.b16 %v226
        %v272 = vunpack.c.h.b16 %v226
        %v273 = vpack.c.b16 %v271, %v269
        %v274 = vpack.c.b16 %v272, %v270
        %vm277 = vcmask 130048
        %v279 = vsel %vm277, %v208, 0
        %v282 = vsel %vm277, %v209, 0
        %v285 = vsel %vm277, %v210, 0
        %v288 = vsel %vm277, %v211, 0
        %290 = vmatprep.subr.bf16.mxu0 %v274
        %291 = vmatpush1.bf16.msra.mxu0 %v273
        %292 = vmatprep.subr.bf16.mxu0 0
        %293 = vmatpush1.bf16.msra.mxu0 0
        %294 = vmatprep.subr.bf16.mxu0 0
        %295 = vmatpush1.bf16.msra.mxu0 0
        %296 = vmatprep.subr.bf16.mxu0 0
        %297 = vmatpush1.bf16.msra.mxu0 0
        %298 = vmatprep.subr.bf16.mxu0 0
        %299 = vmatpush1.bf16.msra.mxu0 0
        %300 = vmatprep.subr.bf16.mxu0 0
        %301 = vmatpush1.bf16.msra.mxu0 0
        %302 = vmatprep.subr.bf16.mxu0 0
        %303 = vmatpush1.bf16.msra.mxu0 0
        %304 = vmatprep.subr.bf16.mxu0 0
        %305 = vmatpush1.bf16.msra.mxu0 0
        %306 = vmatprep.subr.bf16.mxu0 0
        %307 = vmatpush1.bf16.msra.mxu0 0
        %308 = vmatprep.subr.bf16.mxu0 0
        %309 = vmatpush1.bf16.msra.mxu0 0
        %310 = vmatprep.subr.bf16.mxu0 0
        %311 = vmatpush1.bf16.msra.mxu0 0
        %312 = vmatprep.subr.bf16.mxu0 0
        %313 = vmatpush1.bf16.msra.mxu0 0
        %314 = vmatprep.subr.bf16.mxu0 0
        %315 = vmatpush1.bf16.msra.mxu0 0
        %316 = vmatprep.subr.bf16.mxu0 0
        %317 = vmatpush1.bf16.msra.mxu0 0
        %318 = vmatprep.subr.bf16.mxu0 0
        %319 = vmatpush1.bf16.msra.mxu0 0
        %320 = vmatprep.subr.bf16.mxu0 0
        %321 = vmatpush1.bf16.msra.mxu0 0
        %322 = vmatprep.mubr.bf16.mxu0 0
        %323 = vmatmul.mubr.bf16.gmra.mrb[0].mxu0 %v279
        %v324 = vpop.f32.mrb[0].mxu0
        %v325 = vadd.f32 %v230, %v324
        %v326 = vpop.f32.mrb[0].mxu0
        %v327 = vadd.f32 %v230, %v326
        %v328 = vpop.f32.mrb[0].mxu0
        %v329 = vadd.f32 %v235, %v328
        %v330 = vpop.f32.mrb[0].mxu0
        %v331 = vadd.f32 %v235, %v330
        %332 = vmatprep.mubr.bf16.mxu0 0
        %333 = vmatmul.mubr.bf16.gmra.mrb[0].mxu0 %v282
        %v334 = vpop.f32.mrb[0].mxu0
        %v335 = vadd.f32 %v240, %v334
        %v336 = vpop.f32.mrb[0].mxu0
        %v337 = vadd.f32 %v240, %v336
        %v338 = vpop.f32.mrb[0].mxu0
        %v339 = vadd.f32 %v245, %v338
        %v340 = vpop.f32.mrb[0].mxu0
        %v341 = vadd.f32 %v245, %v340
        %342 = vmatprep.mubr.bf16.mxu0 0
        %343 = vmatmul.mubr.bf16.gmra.mrb[0].mxu0 %v285
        %v344 = vpop.f32.mrb[0].mxu0
        %v345 = vadd.f32 %v250, %v344
        %v346 = vpop.f32.mrb[0].mxu0
        %v347 = vadd.f32 %v250, %v346
        %v348 = vpop.f32.mrb[0].mxu0
        %v349 = vadd.f32 %v255, %v348
        %v350 = vpop.f32.mrb[0].mxu0
        %v351 = vadd.f32 %v255, %v350
        %352 = vmatprep.mubr.bf16.mxu0 0
        %353 = vmatmul.mubr.bf16.gmra.mrb[0].mxu0 %v288
        %v354 = vpop.f32.mrb[0].mxu0
        %v355 = vadd.f32 %v260, %v354
        %v356 = vpop.f32.mrb[0].mxu0
        %v357 = vadd.f32 %v260, %v356
        %v358 = vpop.f32.mrb[0].mxu0
        %v359 = vadd.f32 %v265, %v358
        %v360 = vpop.f32.mrb[0].mxu0
        %v361 = vadd.f32 %v265, %v360
        %362 = vdwg.mxu0
        %v363 = vmax.f32 %v325, 0.0
        %v364 = vmax.f32 %v327, 0.0
        %v365 = vmax.f32 %v329, 0.0
        %v366 = vmax.f32 %v331, 0.0
        %v367 = vmax.f32 %v335, 0.0
        %v368 = vmax.f32 %v337, 0.0
        %v369 = vmax.f32 %v339, 0.0
        %v370 = vmax.f32 %v341, 0.0
        %v371 = vmax.f32 %v345, 0.0
        %v372 = vmax.f32 %v347, 0.0
        %v373 = vmax.f32 %v349, 0.0
        %v374 = vmax.f32 %v351, 0.0
        %v375 = vmax.f32 %v355, 0.0
        %v376 = vmax.f32 %v357, 0.0
        %v377 = vmax.f32 %v359, 0.0
        %v378 = vmax.f32 %v361, 0.0
        %v379 = vpack.c.bf16 %v365, %v363
        %v380 = vpack.c.bf16 %v366, %v364
        %v381 = vpack.c.bf16 %v369, %v367
        %v382 = vpack.c.bf16 %v370, %v368
        %v383 = vpack.c.bf16 %v373, %v371
        %v384 = vpack.c.bf16 %v374, %v372
        %v385 = vpack.c.bf16 %v377, %v375
        %v386 = vpack.c.bf16 %v378, %v376
        %388 = vset.pattern.permute.xlu0 64
        %389 = vperm.xlu0 %388, %v212
        %v390 = vpop.permute.xlu0 %389
        %393 = vset.pattern.permute.xlu0 64
        %394 = vperm.xlu0 %393, %v213
        %v395 = vpop.permute.xlu0 %394
        %398 = vset.pattern.permute.xlu0 64
        %399 = vperm.xlu0 %398, %v214
        %v400 = vpop.permute.xlu0 %399
        %403 = vset.pattern.permute.xlu0 64
        %404 = vperm.xlu0 %403, %v215
        %v405 = vpop.permute.xlu0 %404
        %vm407 = vcmask 523264
        %v409 = vsel %vm407, %v216, 0
        %v412 = vsel %vm407, %v217, 0
        %414 = vmatprep.subr.bf16.mxu0 %v380
        %415 = vmatpush1.bf16.msra.mxu0 %v379
        %416 = vmatprep.subr.bf16.mxu0 %v382
        %417 = vmatpush1.bf16.msra.mxu0 %v381
        %418 = vmatprep.subr.bf16.mxu0 %v384
        %419 = vmatpush1.bf16.msra.mxu0 %v383
        %420 = vmatprep.subr.bf16.mxu0 %v386
        %421 = vmatpush1.bf16.msra.mxu0 %v385
        %422 = vmatprep.subr.bf16.mxu0 0
        %423 = vmatpush1.bf16.msra.mxu0 0
        %424 = vmatprep.subr.bf16.mxu0 0
        %425 = vmatpush1.bf16.msra.mxu0 0
        %426 = vmatprep.subr.bf16.mxu0 0
        %427 = vmatpush1.bf16.msra.mxu0 0
        %428 = vmatprep.subr.bf16.mxu0 0
        %429 = vmatpush1.bf16.msra.mxu0 0
        %430 = vmatprep.subr.bf16.mxu0 0
        %431 = vmatpush1.bf16.msra.mxu0 0
        %432 = vmatprep.subr.bf16.mxu0 0
        %433 = vmatpush1.bf16.msra.mxu0 0
        %434 = vmatprep.subr.bf16.mxu0 0
        %435 = vmatpush1.bf16.msra.mxu0 0
        %436 = vmatprep.subr.bf16.mxu0 0
        %437 = vmatpush1.bf16.msra.mxu0 0
        %438 = vmatprep.subr.bf16.mxu0 0
        %439 = vmatpush1.bf16.msra.mxu0 0
        %440 = vmatprep.subr.bf16.mxu0 0
        %441 = vmatpush1.bf16.msra.mxu0 0
        %442 = vmatprep.subr.bf16.mxu0 0
        %443 = vmatpush1.bf16.msra.mxu0 0
        %444 = vmatprep.subr.bf16.mxu0 0
        %445 = vmatpush1.bf16.msra.mxu0 0
        %446 = vmatprep.mubr.bf16.mxu0 0
        %447 = vmatmul.mubr.bf16.gmra.mrb[0].mxu0 %v409
        %v448 = vpop.f32.mrb[0].mxu0
        %v449 = vadd.f32 %v390, %v448
        %v450 = vpop.f32.mrb[0].mxu0
        %v451 = vadd.f32 %v390, %v450
        %v452 = vpop.f32.mrb[0].mxu0
        %v453 = vadd.f32 %v395, %v452
        %v454 = vpop.f32.mrb[0].mxu0
        %v455 = vadd.f32 %v395, %v454
        %456 = vmatprep.mubr.bf16.mxu0 0
        %457 = vmatmul.mubr.bf16.gmra.mrb[0].mxu0 %v412
        %v458 = vpop.f32.mrb[0].mxu0
        %v459 = vadd.f32 %v400, %v458
        %v460 = vpop.f32.mrb[0].mxu0
        %v461 = vadd.f32 %v400, %v460
        %v462 = vpop.f32.mrb[0].mxu0
        %v463 = vadd.f32 %v405, %v462
        %v464 = vpop.f32.mrb[0].mxu0
        %v465 = vadd.f32 %v405, %v464
        %466 = vdwg.mxu0
        %v467 = vmax.f32 %v449, 0.0
        %v468 = vmax.f32 %v451, 0.0
        %v469 = vmax.f32 %v453, 0.0
        %v470 = vmax.f32 %v455, 0.0
        %v471 = vmax.f32 %v459, 0.0
        %v472 = vmax.f32 %v461, 0.0
        %v473 = vmax.f32 %v463, 0.0
        %v474 = vmax.f32 %v465, 0.0
        %v475 = vpack.c.bf16 %v469, %v467
        %v476 = vpack.c.bf16 %v470, %v468
        %v477 = vpack.c.bf16 %v473, %v471
        %v478 = vpack.c.bf16 %v474, %v472
        %480 = vset.pattern.permute.xlu0 64
        %481 = vperm.xlu0 %480, %v218
        %v482 = vpop.permute.xlu0 %481
        %485 = vset.pattern.permute.xlu0 64
        %486 = vperm.xlu0 %485, %v219
        %v487 = vpop.permute.xlu0 %486
        %vm489 = vcmask 261120
        %v491 = vsel %vm489, %v220, 0
        %493 = vmatprep.subr.bf16.mxu0 %v476
        %494 = vmatpush1.bf16.msra.mxu0 %v475
        %495 = vmatprep.subr.bf16.mxu0 %v478
        %496 = vmatpush1.bf16.msra.mxu0 %v477
        %497 = vmatprep.subr.bf16.mxu0 0
        %498 = vmatpush1.bf16.msra.mxu0 0
        %499 = vmatprep.subr.bf16.mxu0 0
        %500 = vmatpush1.bf16.msra.mxu0 0
        %501 = vmatprep.subr.bf16.mxu0 0
        %502 = vmatpush1.bf16.msra.mxu0 0
        %503 = vmatprep.subr.bf16.mxu0 0
        %504 = vmatpush1.bf16.msra.mxu0 0
        %505 = vmatprep.subr.bf16.mxu0 0
        %506 = vmatpush1.bf16.msra.mxu0 0
        %507 = vmatprep.subr.bf16.mxu0 0
        %508 = vmatpush1.bf16.msra.mxu0 0
        %509 = vmatprep.subr.bf16.mxu0 0
        %510 = vmatpush1.bf16.msra.mxu0 0
        %511 = vmatprep.subr.bf16.mxu0 0
        %512 = vmatpush1.bf16.msra.mxu0 0
        %513 = vmatprep.subr.bf16.mxu0 0
        %514 = vmatpush1.bf16.msra.mxu0 0
        %515 = vmatprep.subr.bf16.mxu0 0
        %516 = vmatpush1.bf16.msra.mxu0 0
        %517 = vmatprep.subr.bf16.mxu0 0
        %518 = vmatpush1.bf16.msra.mxu0 0
        %519 = vmatprep.subr.bf16.mxu0 0
        %520 = vmatpush1.bf16.msra.mxu0 0
        %521 = vmatprep.subr.bf16.mxu0 0
        %522 = vmatpush1.bf16.msra.mxu0 0
        %523 = vmatprep.subr.bf16.mxu0 0
        %524 = vmatpush1.bf16.msra.mxu0 0
        %525 = vmatprep.mubr.bf16.mxu0 0
        %526 = vmatmul.mubr.bf16.gmra.mrb[0].mxu0 %v491
        %v527 = vpop.f32.mrb[0].mxu0
        %v528 = vadd.f32 %v482, %v527
        %v529 = vpop.f32.mrb[0].mxu0
        %v530 = vadd.f32 %v482, %v529
        %v531 = vpop.f32.mrb[0].mxu0
        %v532 = vadd.f32 %v487, %v531
        %v533 = vpop.f32.mrb[0].mxu0
        %v534 = vadd.f32 %v487, %v533
        %535 = vdwg.mxu0
        %v536 = vmax.f32 %v528, 0.0
        %v537 = vmax.f32 %v530, 0.0
        %v538 = vmax.f32 %v532, 0.0
        %v539 = vmax.f32 %v534, 0.0
        %v540 = vpack.c.bf16 %v538, %v536
        %v541 = vpack.c.bf16 %v539, %v537
        %543 = vset.pattern.permute.xlu0 64
        %544 = vperm.xlu0 %543, %v221
        %v545 = vpop.permute.xlu0 %544
        %v548 = vsel %vm277, %v222, 0
        %550 = vmatprep.subr.bf16.mxu0 %v541
        %551 = vmatpush1.bf16.msra.mxu0 %v540
        %552 = vmatprep.subr.bf16.mxu0 0
        %553 = vmatpush1.bf16.msra.mxu0 0
        %554 = vmatprep.subr.bf16.mxu0 0
        %555 = vmatpush1.bf16.msra.mxu0 0
        %556 = vmatprep.subr.bf16.mxu0 0
        %557 = vmatpush1.bf16.msra.mxu0 0
        %558 = vmatprep.subr.bf16.mxu0 0
        %559 = vmatpush1.bf16.msra.mxu0 0
        %560 = vmatprep.subr.bf16.mxu0 0
        %561 = vmatpush1.bf16.msra.mxu0 0
        %562 = vmatprep.subr.bf16.mxu0 0
        %563 = vmatpush1.bf16.msra.mxu0 0
        %564 = vmatprep.subr.bf16.mxu0 0
        %565 = vmatpush1.bf16.msra.mxu0 0
        %566 = vmatprep.subr.bf16.mxu0 0
        %567 = vmatpush1.bf16.msra.mxu0 0
        %568 = vmatprep.subr.bf16.mxu0 0
        %569 = vmatpush1.bf16.msra.mxu0 0
        %570 = vmatprep.subr.bf16.mxu0 0
        %571 = vmatpush1.bf16.msra.mxu0 0
        %572 = vmatprep.subr.bf16.mxu0 0
        %573 = vmatpush1.bf16.msra.mxu0 0
        %574 = vmatprep.subr.bf16.mxu0 0
        %575 = vmatpush1.bf16.msra.mxu0 0
        %576 = vmatprep.subr.bf16.mxu0 0
        %577 = vmatpush1.bf16.msra.mxu0 0
        %578 = vmatprep.subr.bf16.mxu0 0
        %579 = vmatpush1.bf16.msra.mxu0 0
        %580 = vmatprep.subr.bf16.mxu0 0
        %581 = vmatpush1.bf16.msra.mxu0 0
        %582 = vmatprep.mubr.bf16.mxu0 0
        %583 = vmatmul.mubr.bf16.gmra.mrb[0].mxu0 %v548
        %v584 = vpop.f32.mrb[0].mxu0
        %v585 = vadd.f32 %v545, %v584
        %v586 = vpop.f32.mrb[0].mxu0
        %v587 = vadd.f32 %v545, %v586
        %v588 = vpop.f32.mrb[0].mxu0
        %v589 = vpop.f32.mrb[0].mxu0
        %590 = vdwg.mxu0
        %v591 = vmax.f32 %v585, 0.0
        %v592 = vmax.f32 %v587, 0.0
        %v593 = vpack.c.bf16 %v591, %v198
        %v594 = vpack.c.bf16 %v592, %v199
        %596 = vset.pattern.permute.xlu0 64
        %597 = vperm.xlu0 %596, %v223
        %v598 = vpop.permute.xlu0 %597
        %v601 = vsel %vm277, %v224, 0
        %603 = vmatprep.subr.bf16.mxu0 %v594
        %604 = vmatpush1.bf16.msra.mxu0 %v593
        %605 = vmatprep.subr.bf16.mxu0 0
        %606 = vmatpush1.bf16.msra.mxu0 0
        %607 = vmatprep.subr.bf16.mxu0 0
        %608 = vmatpush1.bf16.msra.mxu0 0
        %609 = vmatprep.subr.bf16.mxu0 0
        %610 = vmatpush1.bf16.msra.mxu0 0
        %611 = vmatprep.subr.bf16.mxu0 0
        %612 = vmatpush1.bf16.msra.mxu0 0
        %613 = vmatprep.subr.bf16.mxu0 0
        %614 = vmatpush1.bf16.msra.mxu0 0
        %615 = vmatprep.subr.bf16.mxu0 0
        %616 = vmatpush1.bf16.msra.mxu0 0
        %617 = vmatprep.subr.bf16.mxu0 0
        %618 = vmatpush1.bf16.msra.mxu0 0
        %619 = vmatprep.subr.bf16.mxu0 0
        %620 = vmatpush1.bf16.msra.mxu0 0
        %621 = vmatprep.subr.bf16.mxu0 0
        %622 = vmatpush1.bf16.msra.mxu0 0
        %623 = vmatprep.subr.bf16.mxu0 0
        %624 = vmatpush1.bf16.msra.mxu0 0
        %625 = vmatprep.subr.bf16.mxu0 0
        %626 = vmatpush1.bf16.msra.mxu0 0
        %627 = vmatprep.subr.bf16.mxu0 0
        %628 = vmatpush1.bf16.msra.mxu0 0
        %629 = vmatprep.subr.bf16.mxu0 0
        %630 = vmatpush1.bf16.msra.mxu0 0
        %631 = vmatprep.subr.bf16.mxu0 0
        %632 = vmatpush1.bf16.msra.mxu0 0
        %633 = vmatprep.subr.bf16.mxu0 0
        %634 = vmatpush1.bf16.msra.mxu0 0
        %635 = vmatprep.mubr.bf16.mxu0 0
        %636 = vmatmul.mubr.bf16.gmra.mrb[0].mxu0 %v601
        %v637 = vpop.f32.mrb[0].mxu0
        %v638 = vadd.f32 %v598, %v637
        %v639 = vpop.f32.mrb[0].mxu0
        %v640 = vadd.f32 %v598, %v639
        %v641 = vpop.f32.mrb[0].mxu0
        %v642 = vpop.f32.mrb[0].mxu0
        %643 = vdwg.mxu0
        %v646 = vcombine.low %v638, %v640
        %v648 = vunpack.c.l.s4 1966171168
        %v649 = vunpack.c.0.s8 %v648
        %v650 = vlaneseq
        %v651 = vshrl.u32 %v650, 7
        %v652 = vsub.s32 %v649, %v651
        %v653 = vrot.slane %v646, %v652
        %v655 = vunpack.c.l.s4 1966171168
        %v656 = vunpack.c.0.s8 %v655
        %v657 = vlaneseq
        %v658 = vshrl.u32 %v657, 7
        %v659 = vsub.s32 %v656, %v658
        %v660 = vrot.slane %v653, %v659
        %v662 = vlaneseq
        %vm663 = vcmp.ge.s32.totalorder %v662, 0
        %vm664 = vcmp.lt.s32.totalorder %v662, 256
        %vm665 = vmand %vm663, %vm664
        %666 = vst.msk [vmem:[%s189] sm:$0x3] %vm665, %v660
        %s667 = smul.u32 2, %s13
        %p668 = scmp.lt.s32.totalorder %s667, 5
        %s669 = scalar_select %p668, %s667, 5
        %s670 = scalar_lea.vmem %s2, %s669
        // Predicated region
        $region67: #{ncf_forward.1} parent=61 // pred_check
          %p671 = pneg %p78
        $region68: #{ncf_forward.1} parent=61 // pred_check_branch
          %673 = sbr.rel (%p671) target = $region70
        $region69: #{ncf_forward.1} parent=61 // pred_region
          %s674 = smul.u32 2, %s13
        $region70: #{ncf_forward.1} parent=61 // pred_fallthru
          _
      $region62: #{ncf_forward.1} parent=5 // pred_fallthru
        _
      %p675 = scmp.le.s32.totalorder 2, %s8
      // Predicated region
      $region71: #{ncf_forward.1} parent=5 // pred_check
        %p676 = pneg %p675
      $region72: #{ncf_forward.1} parent=5 // pred_check_branch
        %678 = sbr.rel (%p676) target = $region74
      $region73: #{ncf_forward.1} parent=5 // pred_region
        %s679 = ssub.s32 %s8, 2
        // Predicated region
        $region75: #{ncf_forward.1} parent=73 // pred_check
          %p680 = pneg %p84
        $region76: #{ncf_forward.1} parent=73 // pred_check_branch
          %682 = sbr.rel (%p680) target = $region78
        $region77: #{ncf_forward.1} parent=73 // pred_region
          %s683 = smul.u32 2, %s14
          %p684 = scmp.lt.s32.totalorder %s683, 5
          %s685 = scalar_select %p684, %s683, 5
          %s686 = scalar_lea.vmem %s2, %s685
        $region78: #{ncf_forward.1} parent=73 // pred_fallthru
          _
      $region74: #{ncf_forward.1} parent=5 // pred_fallthru
        _
    $region6: #{ncf_forward.1} parent=1 // loop_footer
      %s12 = sadd.s32 1, %s8
    $region7: #{ncf_forward.1} parent=1 // loop_footer_branch
      %7 = sbr.rel target = $region3
    $region8: #{ncf_forward.1} parent=1 // loop_exit
      _

</llo_original>
